<compile_context>
chip_gen: v7x
topology: tpu7x:2x2x1
jax: 0.10.0
libtpu: 0.0.40
codegen_flags: <defaults>
</compile_context>

<pallas_src>
import jax
import jax.numpy as jnp
from jax.experimental import pallas as pl
from jax.experimental.pallas import tpu as pltpu

LANE = 128
_MIB = 1024 * 1024
_VMEM_NEED_CAP = 36 * _MIB     # kernel's own resident need; leaves headroom in v7x's 64 MiB/TC
_VMEM_LIMIT_CAP = 48 * _MIB    # never claim all of v7x's per-TC VMEM
_VMEM_LIMIT_FLOOR = 32 * _MIB  # >= v6e/v7x scoped default, raises v5e's 16 MiB default


def _round_up(x, m):
    return ((x + m - 1) // m) * m


def mlp_decoder_kernel(x_ref, w1_ref, w2_ref, w3_ref, s_ref, b_ref, o_ref):
    # NOTE: when M % tile_m != 0 the last grid step reads unspecified rows past M
    # and its out-of-range output rows are discarded by Pallas.  Every op below
    # is row-local -- do NOT add cross-row reductions to this body.
    x = x_ref[...]
    if x.dtype != jnp.bfloat16:            # accept bf16 x directly; cast f32 in-kernel
        x = x.astype(jnp.bfloat16)
    s = s_ref[...]                         # shared BN scale (1, d_int) f32
    b = b_ref[...]                         # shared BN shift (1, d_int) f32

    # Linear1 -> Dropout (identity, eval) -> BN (f32 affine on accumulator) -> ReLU
    h = jnp.dot(x, w1_ref[...], preferred_element_type=jnp.float32)
    h = jnp.maximum(h * s + b, 0.0)

    # Linear2 -> same shared BN -> ReLU
    h = jnp.dot(h.astype(jnp.bfloat16), w2_ref[...],
                preferred_element_type=jnp.float32)
    h = jnp.maximum(h * s + b, 0.0)

    # Linear3 against the lane-padded w3; store only the real out_features columns.
    y = jnp.dot(h.astype(jnp.bfloat16), w3_ref[...],
                preferred_element_type=jnp.float32)
    o_ref[...] = y[:, : o_ref.shape[-1]].astype(o_ref.dtype)


def _vmem_need_bytes(tile_m, d_enc, d_int, out_pad, out_features, x_itemsize):
    x_buf = 2 * tile_m * d_enc * x_itemsize                              # double-buffered x
    o_buf = 2 * tile_m * out_features * 4                                # double-buffered out
    w_buf = 2 * (d_enc * d_int + d_int * d_int + d_int * out_pad) * 2    # bf16 weights
    v_buf = 2 * 2 * d_int * 4                                            # BN scale / shift
    h_buf = 2 * tile_m * d_int * 4                                       # f32 intermediates
    return x_buf + o_buf + w_buf + v_buf + h_buf


def _choose_tile_m(M, tile_m, d_enc, d_int, out_pad, out_features, x_itemsize):
    # Multiple of 8 (f32 sublanes), never larger than the (rounded-up) row count.
    tile_m = max(8, min(_round_up(tile_m, 8), _round_up(M, 8)))
    # Shrink until the resident VMEM need leaves headroom inside v7x's 64 MiB/TC.
    while tile_m > 8 and _vmem_need_bytes(
            tile_m, d_enc, d_int, out_pad, out_features, x_itemsize) > _VMEM_NEED_CAP:
        tile_m = max(8, _round_up(tile_m // 2, 8))
    # Prefer an even grid of >= 2 steps so the "parallel" M axis splits evenly
    # across v7x's two TensorCores (no-op on single-TC v5e / v6e).
    num = pl.cdiv(M, tile_m)
    if num % 2 == 1 and M > 8:
        tile_m = max(8, _round_up(pl.cdiv(M, num + 1), 8))
    return tile_m


def mlp_decoder(x, w1_bf16, w2_bf16, w3p_bf16, s, b, out_features, *, tile_m=2048):
    """x: (B, N, d_enc) float32 or bfloat16.  Returns (B, N, out_features) float32.

    w1_bf16/w2_bf16/w3p_bf16 are bf16 MXU weights (w3 zero-padded to 128 lanes);
    s/b are the shared BatchNorm inference scale/shift, f32 (1, d_int).
    """
    B, N, d_enc = x.shape
    d_int = w1_bf16.shape[1]
    out_pad = w3p_bf16.shape[1]
    M = B * N
    x2d = x.reshape(M, d_enc)                     # contiguous reshape: no HBM copy

    tile_m = _choose_tile_m(M, tile_m, d_enc, d_int, out_pad, out_features,
                            x2d.dtype.itemsize)
    grid = (pl.cdiv(M, tile_m),)                  # ragged last block handled by Pallas

    need = _vmem_need_bytes(tile_m, d_enc, d_int, out_pad, out_features,
                            x2d.dtype.itemsize)
    vmem_limit = int(min(_VMEM_LIMIT_CAP, max(_VMEM_LIMIT_FLOOR, need + 12 * _MIB)))

    out = pl.pallas_call(
        mlp_decoder_kernel,
        out_shape=jax.ShapeDtypeStruct((M, out_features), jnp.float32),
        grid=grid,
        in_specs=[
            # x: tiled along M, double-buffered by the Pallas pipeline.
            # (Only if profiling shows exposed DMA: add pipeline_mode=pl.Buffered(3).)
            pl.BlockSpec((tile_m, d_enc), lambda i: (i, 0)),
            # Weights / BN vectors: constant index -> fetched once, VMEM-resident.
            pl.BlockSpec((d_enc, d_int), lambda i: (0, 0)),
            pl.BlockSpec((d_int, d_int), lambda i: (0, 0)),
            pl.BlockSpec((d_int, out_pad), lambda i: (0, 0)),
            pl.BlockSpec((1, d_int), lambda i: (0, 0)),
            pl.BlockSpec((1, d_int), lambda i: (0, 0)),
        ],
        out_specs=pl.BlockSpec((tile_m, out_features), lambda i: (i, 0)),
        compiler_params=pltpu.CompilerParams(
            dimension_semantics=("parallel",),
            vmem_limit_bytes=vmem_limit,
        ),
    )(x2d, w1_bf16, w2_bf16, w3p_bf16, s, b)

    return out.reshape(B, N, out_features)


def make_params(key, d_enc, d_int, out_features):
    """Raw module parameters.  PyTorch Linear weights are (out, in); stored here
    pre-transposed as (in, out) so the kernel computes x @ W.  One shared
    BatchNorm1d parameter set, exactly as in the PyTorch module."""
    k = jax.random.split(key, 7)
    w1 = jax.random.normal(k[0], (d_enc, d_int), jnp.float32) * 0.02
    w2 = jax.random.normal(k[1], (d_int, d_int), jnp.float32) * 0.02
    w3 = jax.random.normal(k[2], (d_int, out_features), jnp.float32) * 0.02
    gamma = 1.0 + 0.1 * jax.random.normal(k[3], (d_int,), jnp.float32)
    beta = 0.1 * jax.random.normal(k[4], (d_int,), jnp.float32)
    rmean = 0.05 * jax.random.normal(k[5], (d_int,), jnp.float32)
    rvar = 1.0 + 0.1 * jnp.abs(jax.random.normal(k[6], (d_int,), jnp.float32))
    return w1, w2, w3, gamma, beta, rmean, rvar


def prepare_kernel_params(w1, w2, w3, gamma, beta, rmean, rvar, eps=1e-5):
    """One-time transform: bf16 MXU weights, lane-padded w3, and the shared BN
    (scale, shift) kept in f32 (applied on the f32 accumulator in-kernel)."""
    d_int, out_features = w3.shape
    out_pad = max(LANE, _round_up(out_features, LANE))
    w3p = jnp.zeros((d_int, out_pad), w3.dtype).at[:, :out_features].set(w3)
    inv = gamma / jnp.sqrt(rvar + eps)
    s = inv.reshape(1, d_int).astype(jnp.float32)
    b = (beta - rmean * inv).reshape(1, d_int).astype(jnp.float32)
    return (w1.astype(jnp.bfloat16), w2.astype(jnp.bfloat16),
            w3p.astype(jnp.bfloat16), s, b)


def mlp_decoder_ref(x, w1, w2, w3, gamma, beta, rmean, rvar, eps=1e-5):
    """Pure-JAX eval-mode reference (Dropout = identity, shared BN, running stats)."""
    inv = gamma / jnp.sqrt(rvar + eps)
    bn = lambda h: (h - rmean) * inv + beta
    h = jnp.maximum(bn(x @ w1), 0.0)
    h = jnp.maximum(bn(h @ w2), 0.0)
    return h @ w3


if __name__ == "__main__":
    # Small shapes consistent with the module (defaults d_enc=1024/d_int=256 scaled down).
    B, N = 2, 8
    d_enc, d_int, out_features = 256, 128, 3

    key = jax.random.PRNGKey(0)
    kx, kp = jax.random.split(key)
    x = jax.random.normal(kx, (B, N, d_enc), jnp.float32)

    raw = make_params(kp, d_enc, d_int, out_features)
    kw1, kw2, kw3p, s, b = prepare_kernel_params(*raw)

    # Tiny M (=16) -> tile selection yields tile_m=8 and an even grid of 2 steps.
    y = mlp_decoder(x, kw1, kw2, kw3p, s, b, out_features)
    y = jax.block_until_ready(y)

    y_ref = mlp_decoder_ref(x, *raw)
    assert y.shape == (B, N, out_features)
    # bf16 MXU operands with f32 accumulation -> relaxed tolerance vs f32 reference.
    assert jnp.allclose(y, y_ref, atol=2e-2, rtol=2e-2), "mismatch vs JAX reference"

    print("KERNEL_OK")
</pallas_src>

<mosaic_0001>
module attributes {stable_mosaic.version = 11 : i64} {
  func.func @mlp_decoder_kernel(%arg0: i32, %arg1: memref<8x256xf32, #tpu.memory_space<vmem>>, %arg2: memref<256x128xbf16, #tpu.memory_space<vmem>>, %arg3: memref<128x128xbf16, #tpu.memory_space<vmem>>, %arg4: memref<128x128xbf16, #tpu.memory_space<vmem>>, %arg5: memref<1x128xf32, #tpu.memory_space<vmem>>, %arg6: memref<1x128xf32, #tpu.memory_space<vmem>>, %arg7: memref<8x3xf32, #tpu.memory_space<vmem>>) attributes {dimension_semantics = [#tpu.dimension_semantics<parallel>], iteration_bounds = array<i64: 2>, scalar_prefetch = 0 : i64, scratch_operands = 0 : i64, tpu.core_type = #tpu.core_type<tc>, window_params = [{transform_indices = @transform_0, window_bounds = array<i64: 8, 256>}, {pipeline_mode = #tpu.pipeline_mode<synchronous>, transform_indices = @transform_1, window_bounds = array<i64: 256, 128>}, {pipeline_mode = #tpu.pipeline_mode<synchronous>, transform_indices = @transform_2, window_bounds = array<i64: 128, 128>}, {pipeline_mode = #tpu.pipeline_mode<synchronous>, transform_indices = @transform_3, window_bounds = array<i64: 128, 128>}, {pipeline_mode = #tpu.pipeline_mode<synchronous>, transform_indices = @transform_4, window_bounds = array<i64: 1, 128>}, {pipeline_mode = #tpu.pipeline_mode<synchronous>, transform_indices = @transform_5, window_bounds = array<i64: 1, 128>}, {transform_indices = @transform_6, window_bounds = array<i64: 8, 3>}]} {
    %c0 = arith.constant 0 : index
    %c0_0 = arith.constant 0 : index
    %0 = vector.load %arg1[%c0, %c0_0] : memref<8x256xf32, #tpu.memory_space<vmem>>, vector<8x256xf32>
    %1 = arith.truncf %0 : vector<8x256xf32> to vector<8x256xbf16>
    %c0_1 = arith.constant 0 : index
    %c0_2 = arith.constant 0 : index
    %2 = vector.load %arg5[%c0_1, %c0_2] : memref<1x128xf32, #tpu.memory_space<vmem>>, vector<1x128xf32>
    %c0_3 = arith.constant 0 : index
    %c0_4 = arith.constant 0 : index
    %3 = vector.load %arg6[%c0_3, %c0_4] : memref<1x128xf32, #tpu.memory_space<vmem>>, vector<1x128xf32>
    %c0_5 = arith.constant 0 : index
    %c0_6 = arith.constant 0 : index
    %4 = vector.load %arg2[%c0_5, %c0_6] : memref<256x128xbf16, #tpu.memory_space<vmem>>, vector<256x128xbf16>
    %cst = arith.constant dense<0.000000e+00> : vector<8x128xf32>
    %5 = tpu.matmul %1, %4, %cst {dimension_numbers = #tpu.dot_dimension_numbers<[1], [0], [0], [1], [0, 0, 1, 1], [], []>} : vector<8x256xbf16>, vector<256x128xbf16>, vector<8x128xf32> -> vector<8x128xf32>
    %6 = vector.broadcast %2 : vector<1x128xf32> to vector<8x128xf32>
    %7 = arith.mulf %5, %6 : vector<8x128xf32>
    %8 = vector.broadcast %3 : vector<1x128xf32> to vector<8x128xf32>
    %9 = arith.addf %7, %8 : vector<8x128xf32>
    %cst_7 = arith.constant 0.000000e+00 : f32
    %10 = vector.broadcast %cst_7 : f32 to vector<8x128xf32>
    %11 = arith.maximumf %9, %10 : vector<8x128xf32>
    %12 = arith.truncf %11 : vector<8x128xf32> to vector<8x128xbf16>
    %c0_8 = arith.constant 0 : index
    %c0_9 = arith.constant 0 : index
    %13 = vector.load %arg3[%c0_8, %c0_9] : memref<128x128xbf16, #tpu.memory_space<vmem>>, vector<128x128xbf16>
    %cst_10 = arith.constant dense<0.000000e+00> : vector<8x128xf32>
    %14 = tpu.matmul %12, %13, %cst_10 {dimension_numbers = #tpu.dot_dimension_numbers<[1], [0], [0], [1], [0, 0, 1, 1], [], []>} : vector<8x128xbf16>, vector<128x128xbf16>, vector<8x128xf32> -> vector<8x128xf32>
    %15 = vector.broadcast %2 : vector<1x128xf32> to vector<8x128xf32>
    %16 = arith.mulf %14, %15 : vector<8x128xf32>
    %17 = vector.broadcast %3 : vector<1x128xf32> to vector<8x128xf32>
    %18 = arith.addf %16, %17 : vector<8x128xf32>
    %cst_11 = arith.constant 0.000000e+00 : f32
    %19 = vector.broadcast %cst_11 : f32 to vector<8x128xf32>
    %20 = arith.maximumf %18, %19 : vector<8x128xf32>
    %21 = arith.truncf %20 : vector<8x128xf32> to vector<8x128xbf16>
    %c0_12 = arith.constant 0 : index
    %c0_13 = arith.constant 0 : index
    %22 = vector.load %arg4[%c0_12, %c0_13] : memref<128x128xbf16, #tpu.memory_space<vmem>>, vector<128x128xbf16>
    %cst_14 = arith.constant dense<0.000000e+00> : vector<8x128xf32>
    %23 = tpu.matmul %21, %22, %cst_14 {dimension_numbers = #tpu.dot_dimension_numbers<[1], [0], [0], [1], [0, 0, 1, 1], [], []>} : vector<8x128xbf16>, vector<128x128xbf16>, vector<8x128xf32> -> vector<8x128xf32>
    %24 = vector.extract_strided_slice %23 {offsets = [0, 0], sizes = [8, 3], strides = [1, 1]} : vector<8x128xf32> to vector<8x3xf32>
    %c0_15 = arith.constant 0 : index
    %c0_16 = arith.constant 0 : index
    %25 = vector.load %arg7[%c0_15, %c0_16] : memref<8x3xf32, #tpu.memory_space<vmem>>, vector<8x3xf32>
    tpu.vector_store %arg7[%c0_15, %c0_16], %24 {strides = array<i32>} : memref<8x3xf32, #tpu.memory_space<vmem>>, vector<8x3xf32>,
    return
  }
  func.func @transform_0(%arg0: i32) -> (i32, i32) {
    %c0_i32 = arith.constant 0 : i32
    %c0_i32_0 = arith.constant 0 : i32
    return %arg0, %c0_i32 : i32, i32
  }
  func.func @transform_1(%arg0: i32) -> (i32, i32) {
    %c0_i32 = arith.constant 0 : i32
    %c0_i32_0 = arith.constant 0 : i32
    %c0_i32_1 = arith.constant 0 : i32
    return %c0_i32, %c0_i32_0 : i32, i32
  }
  func.func @transform_2(%arg0: i32) -> (i32, i32) {
    %c0_i32 = arith.constant 0 : i32
    %c0_i32_0 = arith.constant 0 : i32
    %c0_i32_1 = arith.constant 0 : i32
    return %c0_i32, %c0_i32_0 : i32, i32
  }
  func.func @transform_3(%arg0: i32) -> (i32, i32) {
    %c0_i32 = arith.constant 0 : i32
    %c0_i32_0 = arith.constant 0 : i32
    %c0_i32_1 = arith.constant 0 : i32
    return %c0_i32, %c0_i32_0 : i32, i32
  }
  func.func @transform_4(%arg0: i32) -> (i32, i32) {
    %c0_i32 = arith.constant 0 : i32
    %c0_i32_0 = arith.constant 0 : i32
    %c0_i32_1 = arith.constant 0 : i32
    return %c0_i32, %c0_i32_0 : i32, i32
  }
  func.func @transform_5(%arg0: i32) -> (i32, i32) {
    %c0_i32 = arith.constant 0 : i32
    %c0_i32_0 = arith.constant 0 : i32
    %c0_i32_1 = arith.constant 0 : i32
    return %c0_i32, %c0_i32_0 : i32, i32
  }
  func.func @transform_6(%arg0: i32) -> (i32, i32) {
    %c0_i32 = arith.constant 0 : i32
    %c0_i32_0 = arith.constant 0 : i32
    return %arg0, %c0_i32 : i32, i32
  }
}

</mosaic_0001>

<llo_original>
// kernel: tpu_custom_call.1
$region0: #{tpu_custom_call.1}
  #allocation0 [shape = 'u32[]', space=smem, size = 0x4, offset = 0x4, fixed_abs, tag = 'smem constant byte address 0x4 - core index']
  #allocation1 [shape = 'u32[144,128]{1,0:T(1,128)}', space=vmem, size = 0x12000, scoped, tag = 'internal scratch']
  %s0 = inlined_call_operand.hbm [shape: f32[16,256], index: 0, kind: input, shape index: {}]
  %s1 = inlined_call_operand.hbm [shape: bf16[256,128], index: 1, kind: input, shape index: {}]
  %s2 = inlined_call_operand.hbm [shape: bf16[128,128], index: 2, kind: input, shape index: {}]
  %s3 = inlined_call_operand.hbm [shape: bf16[128,128], index: 3, kind: input, shape index: {}]
  %s4 = inlined_call_operand.vmem [shape: f32[1,128], index: 4, kind: input, shape index: {}]
  %s5 = inlined_call_operand.vmem [shape: f32[1,128], index: 5, kind: input, shape index: {}]
  %s6 = inlined_call_operand.vmem [shape: f32[16,3], index: 6, kind: output, shape index: {}]
  %s7 = sld [smem:[#allocation0]]
  $region73: #{tpu_custom_call.1} parent=0
    _
  %s9 = ssub.s32 1, %s7
  %s10 = scalar_select 0, %s9, %s7
  $region1: #{tpu_custom_call.1} parent=0
    #allocation2 [shape = 'u8[16384]{0}', space=vmem, size = 0x4000, scoped, tag = 'input window, operand 0']
    #allocation3 [shape = 's32[2]{0}', space=sflag, size = 0x8, scoped, tag = 'scoped memory for tpu_custom_call.1']
    #allocation4 [shape = 'u8[65536]{0}', space=vmem, size = 0x10000, scoped, tag = 'input window, operand 1, single buffered']
    #allocation5 [shape = 's32[1]{0}', space=sflag, size = 0x4, scoped, tag = 'scoped memory for tpu_custom_call.1']
    #allocation6 [shape = 'u8[32768]{0}', space=vmem, size = 0x8000, scoped, tag = 'input window, operand 2, single buffered']
    #allocation7 [shape = 'u8[32768]{0}', space=vmem, size = 0x8000, scoped, tag = 'input window, operand 3, single buffered']
    #allocation8 [shape = 's32[1]{0}', space=sflag, size = 0x4, scoped, tag = 'scoped memory for tpu_custom_call.1']
    %11 = vsyncpa [#allocation3], 0
    %s12 = scalar_lea.sflag [#allocation3], 1
    %13 = vsyncpa %s12, 0
    %14 = vsyncpa [#allocation5], 0
    %15 = vsyncpa [#allocation8], 0
    loop: start=0, step=1, limit=4
    $region2: #{tpu_custom_call.1} parent=1 // loop_pre_header
      _
    $region3: #{tpu_custom_call.1} parent=1 // loop_header
      %s17 = sphi 0, %s21
      %p18 = scmp.ge.s32.totalorder %s17, 4
      %s27 = sphi 0, %s29
      %s30 = sphi 0, %s27
      %s31 = sphi 0, %s30
      %s47 = sphi 0, %s31
      %s51 = sphi 0, %s51
      %s53 = sphi 0, %s51
      %s54 = sphi 0, %s53
      %s68 = sphi 0, %s54
      %s72 = sphi 0, %s72
      %s74 = sphi 0, %s72
      %s75 = sphi 0, %s74
      %s89 = sphi 0, %s75
      %s93 = sphi 0, %s93
      %s95 = sphi 0, %s93
      %s96 = sphi 0, %s95
      %s110 = sphi 0, %s96
      %s114 = sphi 0, %s114
      %s116 = sphi 0, %s114
      %s117 = sphi 0, %s116
      %s131 = sphi 0, %s117
      %s135 = sphi 0, %s135
      %s137 = sphi 0, %s135
      %s138 = sphi 0, %s137
      %s152 = sphi 0, %s138
      %s158 = sphi 0, %s160
      %s161 = sphi 0, %s158
      %s162 = sphi 0, %s161
      %s178 = sphi 0, %s162
    $region4: #{tpu_custom_call.1} parent=1 // loop_header_branch
      %20 = sbr.rel (%p18) target = $region8
    $region5: #{tpu_custom_call.1} parent=1 // loop_body
      %s22 = ssub.s32 %s17, 1
      %s23 = ssub.s32 %s17, 2
      %s24 = sadd.s32 %s17, 1
      %s25 = ssub.s32 %s17, %s24
      %p26 = scmp.eq.s32.totalorder %s25, 0
      %s28 = sadd.s32 %s27, 1
      %s29 = scalar_select %p26, %s27, %s28
      %p32 = pneg %p26
      %p33 = scmp.eq.s32.totalorder %s17, 1
      %p34 = por %p32, %p33
      %p35 = scmp.ne.s32.totalorder %s27, %s30
      %p36 = scmp.eq.s32.totalorder %s17, 0
      %p37 = por %p35, %p36
      %p38 = scmp.ne.s32.totalorder %s27, %s30
      %p39 = scmp.eq.s32.totalorder %s22, 1
      %p40 = por %p38, %p39
      %p41 = scmp.ne.s32.totalorder %s30, %s31
      %p42 = scmp.eq.s32.totalorder %s22, 0
      %p43 = por %p41, %p42
      %p44 = scmp.ne.s32.totalorder %s30, %s31
      %p45 = scmp.eq.s32.totalorder %s23, 1
      %p46 = por %p44, %p45
      %p48 = scmp.ne.s32.totalorder %s31, %s47
      %p49 = scmp.eq.s32.totalorder %s23, 0
      %p50 = por %p48, %p49
      %s52 = sadd.s32 %s51, 1
      %p55 = scmp.eq.s32.totalorder %s17, 1
      %p56 = scmp.ne.s32.totalorder %s51, %s53
      %p57 = scmp.eq.s32.totalorder %s17, 0
      %p58 = por %p56, %p57
      %p59 = scmp.ne.s32.totalorder %s51, %s53
      %p60 = scmp.eq.s32.totalorder %s22, 1
      %p61 = por %p59, %p60
      %p62 = scmp.ne.s32.totalorder %s53, %s54
      %p63 = scmp.eq.s32.totalorder %s22, 0
      %p64 = por %p62, %p63
      %p65 = scmp.ne.s32.totalorder %s53, %s54
      %p66 = scmp.eq.s32.totalorder %s23, 1
      %p67 = por %p65, %p66
      %p69 = scmp.ne.s32.totalorder %s54, %s68
      %p70 = scmp.eq.s32.totalorder %s23, 0
      %p71 = por %p69, %p70
      %s73 = sadd.s32 %s72, 1
      %p76 = scmp.eq.s32.totalorder %s17, 1
      %p77 = scmp.ne.s32.totalorder %s72, %s74
      %p78 = scmp.eq.s32.totalorder %s17, 0
      %p79 = por %p77, %p78
      %p80 = scmp.ne.s32.totalorder %s72, %s74
      %p81 = scmp.eq.s32.totalorder %s22, 1
      %p82 = por %p80, %p81
      %p83 = scmp.ne.s32.totalorder %s74, %s75
      %p84 = scmp.eq.s32.totalorder %s22, 0
      %p85 = por %p83, %p84
      %p86 = scmp.ne.s32.totalorder %s74, %s75
      %p87 = scmp.eq.s32.totalorder %s23, 1
      %p88 = por %p86, %p87
      %p90 = scmp.ne.s32.totalorder %s75, %s89
      %p91 = scmp.eq.s32.totalorder %s23, 0
      %p92 = por %p90, %p91
      %s94 = sadd.s32 %s93, 1
      %p97 = scmp.eq.s32.totalorder %s17, 1
      %p98 = scmp.ne.s32.totalorder %s93, %s95
      %p99 = scmp.eq.s32.totalorder %s17, 0
      %p100 = por %p98, %p99
      %p101 = scmp.ne.s32.totalorder %s93, %s95
      %p102 = scmp.eq.s32.totalorder %s22, 1
      %p103 = por %p101, %p102
      %p104 = scmp.ne.s32.totalorder %s95, %s96
      %p105 = scmp.eq.s32.totalorder %s22, 0
      %p106 = por %p104, %p105
      %p107 = scmp.ne.s32.totalorder %s95, %s96
      %p108 = scmp.eq.s32.totalorder %s23, 1
      %p109 = por %p107, %p108
      %p111 = scmp.ne.s32.totalorder %s96, %s110
      %p112 = scmp.eq.s32.totalorder %s23, 0
      %p113 = por %p111, %p112
      %s115 = sadd.s32 %s114, 1
      %p118 = scmp.eq.s32.totalorder %s17, 1
      %p119 = scmp.ne.s32.totalorder %s114, %s116
      %p120 = scmp.eq.s32.totalorder %s17, 0
      %p121 = por %p119, %p120
      %p122 = scmp.ne.s32.totalorder %s114, %s116
      %p123 = scmp.eq.s32.totalorder %s22, 1
      %p124 = por %p122, %p123
      %p125 = scmp.ne.s32.totalorder %s116, %s117
      %p126 = scmp.eq.s32.totalorder %s22, 0
      %p127 = por %p125, %p126
      %p128 = scmp.ne.s32.totalorder %s116, %s117
      %p129 = scmp.eq.s32.totalorder %s23, 1
      %p130 = por %p128, %p129
      %p132 = scmp.ne.s32.totalorder %s117, %s131
      %p133 = scmp.eq.s32.totalorder %s23, 0
      %p134 = por %p132, %p133
      %s136 = sadd.s32 %s135, 1
      %p139 = scmp.eq.s32.totalorder %s17, 1
      %p140 = scmp.ne.s32.totalorder %s135, %s137
      %p141 = scmp.eq.s32.totalorder %s17, 0
      %p142 = por %p140, %p141
      %p143 = scmp.ne.s32.totalorder %s135, %s137
      %p144 = scmp.eq.s32.totalorder %s22, 1
      %p145 = por %p143, %p144
      %p146 = scmp.ne.s32.totalorder %s137, %s138
      %p147 = scmp.eq.s32.totalorder %s22, 0
      %p148 = por %p146, %p147
      %p149 = scmp.ne.s32.totalorder %s137, %s138
      %p150 = scmp.eq.s32.totalorder %s23, 1
      %p151 = por %p149, %p150
      %p153 = scmp.ne.s32.totalorder %s138, %s152
      %p154 = scmp.eq.s32.totalorder %s23, 0
      %p155 = por %p153, %p154
      %s156 = ssub.s32 %s17, %s24
      %p157 = scmp.eq.s32.totalorder %s156, 0
      %s159 = sadd.s32 %s158, 1
      %s160 = scalar_select %p157, %s158, %s159
      %p163 = pneg %p157
      %p164 = scmp.eq.s32.totalorder %s17, 1
      %p165 = por %p163, %p164
      %p166 = scmp.ne.s32.totalorder %s158, %s161
      %p167 = scmp.eq.s32.totalorder %s17, 0
      %p168 = por %p166, %p167
      %p169 = scmp.ne.s32.totalorder %s158, %s161
      %p170 = scmp.eq.s32.totalorder %s22, 1
      %p171 = por %p169, %p170
      %p172 = scmp.ne.s32.totalorder %s161, %s162
      %p173 = scmp.eq.s32.totalorder %s22, 0
      %p174 = por %p172, %p173
      %p175 = scmp.ne.s32.totalorder %s161, %s162
      %p176 = scmp.eq.s32.totalorder %s23, 1
      %p177 = por %p175, %p176
      %p179 = scmp.ne.s32.totalorder %s162, %s178
      %p180 = scmp.eq.s32.totalorder %s23, 0
      %p181 = por %p179, %p180
      %p182 = scmp.le.s32.totalorder 1, %s17
      %p183 = scmp.lt.s32.totalorder %s17, 3
      %p184 = pnand %p182, %p183
      %p185 = pneg %p184
      // Predicated region
      $region9: #{tpu_custom_call.1} parent=5 // pred_check
        _
      $region10: #{tpu_custom_call.1} parent=5 // pred_check_branch
        %187 = sbr.rel (%p184) target = $region12
      $region11: #{tpu_custom_call.1} parent=5 // pred_region
        %s188 = ssub.s32 %s17, 1
        // Predicated region
        $region13: #{tpu_custom_call.1} parent=11 // pred_check
          %p189 = pneg %p64
        $region14: #{tpu_custom_call.1} parent=11 // pred_check_branch
          %191 = sbr.rel (%p189) target = $region16
        $region15: #{tpu_custom_call.1} parent=11 // pred_region
          %s193 = ssub.s32 2048, 2048
          %194 = vsyncadd [#allocation5], %s193
          %s195 = sshll.u32 [#allocation4], 4
          %s196 = int_to_ptr.vmem [resolvable:$true] %s195
          %201 = dma.hbm_to_vmem [thread:$0]  %s1, 2048, %s196, [#allocation5], 64, 64, 4
        $region16: #{tpu_custom_call.1} parent=11 // pred_fallthru
          _
        // Predicated region
        $region17: #{tpu_custom_call.1} parent=11 // pred_check
          %p202 = pneg %p85
        $region18: #{tpu_custom_call.1} parent=11 // pred_check_branch
          %204 = sbr.rel (%p202) target = $region20
        $region19: #{tpu_custom_call.1} parent=11 // pred_region
          %s206 = ssub.s32 1024, 1024
          %207 = vsyncadd [#allocation5], %s206
          %s208 = sshll.u32 [#allocation6], 4
          %s209 = int_to_ptr.vmem [resolvable:$true] %s208
          %214 = dma.hbm_to_vmem [thread:$0]  %s2, 1024, %s209, [#allocation5], 64, 64, 4
        $region20: #{tpu_custom_call.1} parent=11 // pred_fallthru
          _
        // Predicated region
        $region21: #{tpu_custom_call.1} parent=11 // pred_check
          %p215 = pneg %p106
        $region22: #{tpu_custom_call.1} parent=11 // pred_check_branch
          %217 = sbr.rel (%p215) target = $region24
        $region23: #{tpu_custom_call.1} parent=11 // pred_region
          %s219 = ssub.s32 1024, 1024
          %220 = vsyncadd [#allocation8], %s219
          %s221 = sshll.u32 [#allocation7], 4
          %s222 = int_to_ptr.vmem [resolvable:$true] %s221
          %227 = dma.hbm_to_vmem [thread:$0]  %s3, 1024, %s222, [#allocation8], 64, 64, 4
        $region24: #{tpu_custom_call.1} parent=11 // pred_fallthru
          _
        // Predicated region
        $region25: #{tpu_custom_call.1} parent=11 // pred_check
          %p228 = pneg %p127
        $region26: #{tpu_custom_call.1} parent=11 // pred_check_branch
          %230 = sbr.rel (%p228) target = $region28
        $region27: #{tpu_custom_call.1} parent=11 // pred_region
          _
        $region28: #{tpu_custom_call.1} parent=11 // pred_fallthru
          _
        // Predicated region
        $region29: #{tpu_custom_call.1} parent=11 // pred_check
          %p231 = pneg %p148
        $region30: #{tpu_custom_call.1} parent=11 // pred_check_branch
          %233 = sbr.rel (%p231) target = $region32
        $region31: #{tpu_custom_call.1} parent=11 // pred_region
          _
        $region32: #{tpu_custom_call.1} parent=11 // pred_fallthru
          _
      $region12: #{tpu_custom_call.1} parent=5 // pred_fallthru
        _
      %p234 = scmp.lt.s32.totalorder %s17, 2
      // Predicated region
      $region33: #{tpu_custom_call.1} parent=5 // pred_check
        %p235 = pneg %p234
      $region34: #{tpu_custom_call.1} parent=5 // pred_check_branch
        %237 = sbr.rel (%p235) target = $region36
      $region35: #{tpu_custom_call.1} parent=5 // pred_region
        // Predicated region
        $region37: #{tpu_custom_call.1} parent=35 // pred_check
          %p238 = pneg %p37
        $region38: #{tpu_custom_call.1} parent=35 // pred_check_branch
          %240 = sbr.rel (%p238) target = $region40
        $region39: #{tpu_custom_call.1} parent=35 // pred_region
          %s241 = sand.u32 %s27, 1
          %s242 = scalar_lea.sflag [#allocation3], %s241
          %s243 = sand.u32 %s27, 1
          %s244 = smul.addr %s243, 16
          %s245 = scalar_lea.vmem [#allocation2], %s244
          %s247 = ssub.s32 256, 256
          %248 = vsyncadd %s242, %s247
          %s249 = smul.addr %s17, 2
          %s250 = smul.addr %s249, 128
          %s251 = scalar_lea.hbm %s0, %s250
          %s253 = sshll.u32 %s245, 4
          %s254 = int_to_ptr.vmem [resolvable:$true] %s253
          %256 = dma.hbm_to_vmem [thread:$0]  %s251, 256, %s254, %s242
        $region40: #{tpu_custom_call.1} parent=35 // pred_fallthru
          _
      $region36: #{tpu_custom_call.1} parent=5 // pred_fallthru
        _
      %p257 = scmp.le.s32.totalorder 1, %s17
      %p258 = scmp.lt.s32.totalorder %s17, 3
      %p259 = pnand %p257, %p258
      %p260 = pneg %p259
      // Predicated region
      $region41: #{tpu_custom_call.1} parent=5 // pred_check
        _
      $region42: #{tpu_custom_call.1} parent=5 // pred_check_branch
        %262 = sbr.rel (%p259) target = $region44
      $region43: #{tpu_custom_call.1} parent=5 // pred_region
        %s263 = ssub.s32 %s17, 1
        %s264 = sand.u32 %s30, 1
        %s265 = scalar_lea.sflag [#allocation3], %s264
        %s266 = sand.u32 %s30, 1
        %s267 = smul.addr %s266, 16
        %s268 = scalar_lea.vmem [#allocation2], %s267
        // Predicated region
        $region45: #{tpu_custom_call.1} parent=43 // pred_check
          %p269 = pneg %p43
        $region46: #{tpu_custom_call.1} parent=43 // pred_check_branch
          %271 = sbr.rel (%p269) target = $region48
        $region47: #{tpu_custom_call.1} parent=43 // pred_region
          %272 = dma.done %s265, 256
        $region48: #{tpu_custom_call.1} parent=43 // pred_fallthru
          _
        // Predicated region
        $region49: #{tpu_custom_call.1} parent=43 // pred_check
          %p273 = pneg %p64
        $region50: #{tpu_custom_call.1} parent=43 // pred_check_branch
          %275 = sbr.rel (%p273) target = $region52
        $region51: #{tpu_custom_call.1} parent=43 // pred_region
          %276 = dma.done [#allocation5], 2048
        $region52: #{tpu_custom_call.1} parent=43 // pred_fallthru
          _
        // Predicated region
        $region53: #{tpu_custom_call.1} parent=43 // pred_check
          %p277 = pneg %p85
        $region54: #{tpu_custom_call.1} parent=43 // pred_check_branch
          %279 = sbr.rel (%p277) target = $region56
        $region55: #{tpu_custom_call.1} parent=43 // pred_region
          %280 = dma.done [#allocation5], 1024
        $region56: #{tpu_custom_call.1} parent=43 // pred_fallthru
          _
        // Predicated region
        $region57: #{tpu_custom_call.1} parent=43 // pred_check
          %p281 = pneg %p106
        $region58: #{tpu_custom_call.1} parent=43 // pred_check_branch
          %283 = sbr.rel (%p281) target = $region60
        $region59: #{tpu_custom_call.1} parent=43 // pred_region
          %284 = dma.done [#allocation8], 1024
        $region60: #{tpu_custom_call.1} parent=43 // pred_fallthru
          _
        %s285 = sand.u32 %s30, 1
        %s286 = scalar_lea.sflag [#allocation3], %s285
        %s287 = sand.u32 %s30, 1
        %s288 = smul.addr %s287, 16
        %s289 = scalar_lea.vmem [#allocation2], %s288
        %p290 = pneg %p43
        %p291 = pneg %p40
        %p292 = pneg %p64
        %p293 = pneg %p61
        %p294 = pneg %p85
        %p295 = pneg %p82
        %p296 = pneg %p106
        %p297 = pneg %p103
        %p298 = pneg %p127
        %p299 = pneg %p124
        %p300 = pneg %p148
        %p301 = pneg %p145
        %p302 = pneg %p174
        %p303 = pneg %p171
        %p304 = scmp.lt.s32.totalorder %s22, 1
        %s305 = scalar_select %p304, %s22, 1
        %s306 = smul.addr %s305, 8
        %s307 = scalar_lea.vmem %s6, %s306
        %p308 = scmp.lt.s32.totalorder %s22, 1
        %s309 = scalar_select %p308, %s22, 1
        %s310 = smul.addr %s309, 8
        %s311 = scalar_lea.vmem %s6, %s310
        %v313 = vld [vmem:[%s268] sm:$0xff]
        %v314 = vld [vmem:[%s268 + $0x8] sm:$0xff]
        %v315 = vpack.c.bf16 %v313, %v313
        %v316 = vpack.c.bf16 %v314, %v314
        %v317 = vld [vmem:[%s4] sm:$0x1]
        %v318 = vld [vmem:[%s5] sm:$0x1]
        %v319 = vld [vmem:[#allocation4] sm:$0xf]
        %v320 = vld [vmem:[#allocation4 + $0x4] sm:$0xf]
        %v321 = vld [vmem:[#allocation4 + $0x8] sm:$0xf]
        %v322 = vld [vmem:[#allocation4 + $0xc] sm:$0xf]
        %v323 = vld [vmem:[#allocation4 + $0x10] sm:$0xf]
        %v324 = vld [vmem:[#allocation4 + $0x14] sm:$0xf]
        %v325 = vld [vmem:[#allocation4 + $0x18] sm:$0xf]
        %v326 = vld [vmem:[#allocation4 + $0x1c] sm:$0xf]
        %v327 = vld [vmem:[#allocation4 + $0x20] sm:$0xf]
        %v328 = vld [vmem:[#allocation4 + $0x24] sm:$0xf]
        %v329 = vld [vmem:[#allocation4 + $0x28] sm:$0xf]
        %v330 = vld [vmem:[#allocation4 + $0x2c] sm:$0xf]
        %v331 = vld [vmem:[#allocation4 + $0x30] sm:$0xf]
        %v332 = vld [vmem:[#allocation4 + $0x34] sm:$0xf]
        %v333 = vld [vmem:[#allocation4 + $0x38] sm:$0xf]
        %v334 = vld [vmem:[#allocation4 + $0x3c] sm:$0xf]
        %v335 = vld [vmem:[#allocation4 + $0x40] sm:$0xf]
        %v336 = vld [vmem:[#allocation4 + $0x44] sm:$0xf]
        %v337 = vld [vmem:[#allocation4 + $0x48] sm:$0xf]
        %v338 = vld [vmem:[#allocation4 + $0x4c] sm:$0xf]
        %v339 = vld [vmem:[#allocation4 + $0x50] sm:$0xf]
        %v340 = vld [vmem:[#allocation4 + $0x54] sm:$0xf]
        %v341 = vld [vmem:[#allocation4 + $0x58] sm:$0xf]
        %v342 = vld [vmem:[#allocation4 + $0x5c] sm:$0xf]
        %v343 = vld [vmem:[#allocation4 + $0x60] sm:$0xf]
        %v344 = vld [vmem:[#allocation4 + $0x64] sm:$0xf]
        %v345 = vld [vmem:[#allocation4 + $0x68] sm:$0xf]
        %v346 = vld [vmem:[#allocation4 + $0x6c] sm:$0xf]
        %v347 = vld [vmem:[#allocation4 + $0x70] sm:$0xf]
        %v348 = vld [vmem:[#allocation4 + $0x74] sm:$0xf]
        %v349 = vld [vmem:[#allocation4 + $0x78] sm:$0xf]
        %v350 = vld [vmem:[#allocation4 + $0x7c] sm:$0xf]
        %v383 = vunpack.c.l.b16 %v319
        %v384 = vunpack.c.l.b16 %v320
        %v385 = vunpack.c.l.b16 %v321
        %v386 = vunpack.c.l.b16 %v322
        %v387 = vunpack.c.l.b16 %v323
        %v388 = vunpack.c.l.b16 %v324
        %v389 = vunpack.c.l.b16 %v325
        %v390 = vunpack.c.l.b16 %v326
        %v391 = vunpack.c.l.b16 %v327
        %v392 = vunpack.c.l.b16 %v328
        %v393 = vunpack.c.l.b16 %v329
        %v394 = vunpack.c.l.b16 %v330
        %v395 = vunpack.c.l.b16 %v331
        %v396 = vunpack.c.l.b16 %v332
        %v397 = vunpack.c.l.b16 %v333
        %v398 = vunpack.c.l.b16 %v334
        %v399 = vunpack.c.l.b16 %v335
        %v400 = vunpack.c.l.b16 %v336
        %v401 = vunpack.c.l.b16 %v337
        %v402 = vunpack.c.l.b16 %v338
        %v403 = vunpack.c.l.b16 %v339
        %v404 = vunpack.c.l.b16 %v340
        %v405 = vunpack.c.l.b16 %v341
        %v406 = vunpack.c.l.b16 %v342
        %v407 = vunpack.c.l.b16 %v343
        %v408 = vunpack.c.l.b16 %v344
        %v409 = vunpack.c.l.b16 %v345
        %v410 = vunpack.c.l.b16 %v346
        %v411 = vunpack.c.l.b16 %v347
        %v412 = vunpack.c.l.b16 %v348
        %v413 = vunpack.c.l.b16 %v349
        %v414 = vunpack.c.l.b16 %v350
        %v415 = vpack.c.b16 %v384, %v383
        %v416 = vpack.c.b16 %v386, %v385
        %v417 = vpack.c.b16 %v388, %v387
        %v418 = vpack.c.b16 %v390, %v389
        %v419 = vpack.c.b16 %v392, %v391
        %v420 = vpack.c.b16 %v394, %v393
        %v421 = vpack.c.b16 %v396, %v395
        %v422 = vpack.c.b16 %v398, %v397
        %v423 = vpack.c.b16 %v400, %v399
        %v424 = vpack.c.b16 %v402, %v401
        %v425 = vpack.c.b16 %v404, %v403
        %v426 = vpack.c.b16 %v406, %v405
        %v427 = vpack.c.b16 %v408, %v407
        %v428 = vpack.c.b16 %v410, %v409
        %v429 = vpack.c.b16 %v412, %v411
        %v430 = vpack.c.b16 %v414, %v413
        %447 = vmatprep.subr.bf16.mxu0 0
        %448 = vmatpush1.bf16.msra.mxu0 %v415
        %449 = vmatprep.subr.bf16.mxu0 0
        %450 = vmatpush1.bf16.msra.mxu0 %v416
        %451 = vmatprep.subr.bf16.mxu0 0
        %452 = vmatpush1.bf16.msra.mxu0 %v417
        %453 = vmatprep.subr.bf16.mxu0 0
        %454 = vmatpush1.bf16.msra.mxu0 %v418
        %455 = vmatprep.subr.bf16.mxu0 0
        %456 = vmatpush1.bf16.msra.mxu0 %v419
        %457 = vmatprep.subr.bf16.mxu0 0
        %458 = vmatpush1.bf16.msra.mxu0 %v420
        %459 = vmatprep.subr.bf16.mxu0 0
        %460 = vmatpush1.bf16.msra.mxu0 %v421
        %461 = vmatprep.subr.bf16.mxu0 0
        %462 = vmatpush1.bf16.msra.mxu0 %v422
        %463 = vmatprep.subr.bf16.mxu0 0
        %464 = vmatpush1.bf16.msra.mxu0 %v423
        %465 = vmatprep.subr.bf16.mxu0 0
        %466 = vmatpush1.bf16.msra.mxu0 %v424
        %467 = vmatprep.subr.bf16.mxu0 0
        %468 = vmatpush1.bf16.msra.mxu0 %v425
        %469 = vmatprep.subr.bf16.mxu0 0
        %470 = vmatpush1.bf16.msra.mxu0 %v426
        %471 = vmatprep.subr.bf16.mxu0 0
        %472 = vmatpush1.bf16.msra.mxu0 %v427
        %473 = vmatprep.subr.bf16.mxu0 0
        %474 = vmatpush1.bf16.msra.mxu0 %v428
        %475 = vmatprep.subr.bf16.mxu0 0
        %476 = vmatpush1.bf16.msra.mxu0 %v429
        %477 = vmatprep.subr.bf16.mxu0 0
        %478 = vmatpush1.bf16.msra.mxu0 %v430
        %479 = vmatprep.mubr.bf16.mxu0 %v316
        %480 = vmatmul.mubr.bf16.gmra.mrb[0].mxu0 %v315
        %v481 = vpop.f32.mrb[0].mxu0
        %v482 = vadd.f32 0.0, %v481
        %v483 = vpop.f32.mrb[0].mxu0
        %v484 = vpop.f32.mrb[0].mxu0
        %v485 = vpop.f32.mrb[0].mxu0
        %486 = vdwg.mxu0
        %v488 = vlaneseq
        %v489 = vshrl.u32 %v488, 7
        %v490 = vsub.s32 0, %v489
        %v491 = vrot.slane %v317, %v490
        %v493 = vmul.f32 %v482, %v491
        %v495 = vlaneseq
        %v496 = vshrl.u32 %v495, 7
        %v497 = vsub.s32 0, %v496
        %v498 = vrot.slane %v318, %v497
        %v500 = vadd.f32 %v493, %v498
        %v501 = vmax.f32 %v500, 0.0
        %v502 = vpack.c.bf16 %v501, %v501
        %v503 = vld [vmem:[#allocation6] sm:$0xf]
        %v504 = vld [vmem:[#allocation6 + $0x4] sm:$0xf]
        %v505 = vld [vmem:[#allocation6 + $0x8] sm:$0xf]
        %v506 = vld [vmem:[#allocation6 + $0xc] sm:$0xf]
        %v507 = vld [vmem:[#allocation6 + $0x10] sm:$0xf]
        %v508 = vld [vmem:[#allocation6 + $0x14] sm:$0xf]
        %v509 = vld [vmem:[#allocation6 + $0x18] sm:$0xf]
        %v510 = vld [vmem:[#allocation6 + $0x1c] sm:$0xf]
        %v511 = vld [vmem:[#allocation6 + $0x20] sm:$0xf]
        %v512 = vld [vmem:[#allocation6 + $0x24] sm:$0xf]
        %v513 = vld [vmem:[#allocation6 + $0x28] sm:$0xf]
        %v514 = vld [vmem:[#allocation6 + $0x2c] sm:$0xf]
        %v515 = vld [vmem:[#allocation6 + $0x30] sm:$0xf]
        %v516 = vld [vmem:[#allocation6 + $0x34] sm:$0xf]
        %v517 = vld [vmem:[#allocation6 + $0x38] sm:$0xf]
        %v518 = vld [vmem:[#allocation6 + $0x3c] sm:$0xf]
        %v535 = vunpack.c.l.b16 %v503
        %v536 = vunpack.c.l.b16 %v504
        %v537 = vunpack.c.l.b16 %v505
        %v538 = vunpack.c.l.b16 %v506
        %v539 = vunpack.c.l.b16 %v507
        %v540 = vunpack.c.l.b16 %v508
        %v541 = vunpack.c.l.b16 %v509
        %v542 = vunpack.c.l.b16 %v510
        %v543 = vunpack.c.l.b16 %v511
        %v544 = vunpack.c.l.b16 %v512
        %v545 = vunpack.c.l.b16 %v513
        %v546 = vunpack.c.l.b16 %v514
        %v547 = vunpack.c.l.b16 %v515
        %v548 = vunpack.c.l.b16 %v516
        %v549 = vunpack.c.l.b16 %v517
        %v550 = vunpack.c.l.b16 %v518
        %v551 = vpack.c.b16 %v536, %v535
        %v552 = vpack.c.b16 %v538, %v537
        %v553 = vpack.c.b16 %v540, %v539
        %v554 = vpack.c.b16 %v542, %v541
        %v555 = vpack.c.b16 %v544, %v543
        %v556 = vpack.c.b16 %v546, %v545
        %v557 = vpack.c.b16 %v548, %v547
        %v558 = vpack.c.b16 %v550, %v549
        %567 = vmatprep.subr.bf16.mxu0 0
        %568 = vmatpush1.bf16.msra.mxu0 %v551
        %569 = vmatprep.subr.bf16.mxu0 0
        %570 = vmatpush1.bf16.msra.mxu0 %v552
        %571 = vmatprep.subr.bf16.mxu0 0
        %572 = vmatpush1.bf16.msra.mxu0 %v553
        %573 = vmatprep.subr.bf16.mxu0 0
        %574 = vmatpush1.bf16.msra.mxu0 %v554
        %575 = vmatprep.subr.bf16.mxu0 0
        %576 = vmatpush1.bf16.msra.mxu0 %v555
        %577 = vmatprep.subr.bf16.mxu0 0
        %578 = vmatpush1.bf16.msra.mxu0 %v556
        %579 = vmatprep.subr.bf16.mxu0 0
        %580 = vmatpush1.bf16.msra.mxu0 %v557
        %581 = vmatprep.subr.bf16.mxu0 0
        %582 = vmatpush1.bf16.msra.mxu0 %v558
        %583 = vmatprep.subr.bf16.mxu0 0
        %584 = vmatpush1.bf16.msra.mxu0 0
        %585 = vmatprep.subr.bf16.mxu0 0
        %586 = vmatpush1.bf16.msra.mxu0 0
        %587 = vmatprep.subr.bf16.mxu0 0
        %588 = vmatpush1.bf16.msra.mxu0 0
        %589 = vmatprep.subr.bf16.mxu0 0
        %590 = vmatpush1.bf16.msra.mxu0 0
        %591 = vmatprep.subr.bf16.mxu0 0
        %592 = vmatpush1.bf16.msra.mxu0 0
        %593 = vmatprep.subr.bf16.mxu0 0
        %594 = vmatpush1.bf16.msra.mxu0 0
        %595 = vmatprep.subr.bf16.mxu0 0
        %596 = vmatpush1.bf16.msra.mxu0 0
        %597 = vmatprep.subr.bf16.mxu0 0
        %598 = vmatpush1.bf16.msra.mxu0 0
        %599 = vmatprep.mubr.bf16.mxu0 0
        %600 = vmatmul.mubr.bf16.gmra.mrb[0].mxu0 %v502
        %v601 = vpop.f32.mrb[0].mxu0
        %v602 = vadd.f32 0.0, %v601
        %v603 = vpop.f32.mrb[0].mxu0
        %v604 = vpop.f32.mrb[0].mxu0
        %v605 = vpop.f32.mrb[0].mxu0
        %606 = vdwg.mxu0
        %v607 = vmul.f32 %v602, %v491
        %v608 = vadd.f32 %v607, %v498
        %v609 = vmax.f32 %v608, 0.0
        %v610 = vpack.c.bf16 %v609, %v609
        %v611 = vld [vmem:[#allocation7] sm:$0xf]
        %v612 = vld [vmem:[#allocation7 + $0x4] sm:$0xf]
        %v613 = vld [vmem:[#allocation7 + $0x8] sm:$0xf]
        %v614 = vld [vmem:[#allocation7 + $0xc] sm:$0xf]
        %v615 = vld [vmem:[#allocation7 + $0x10] sm:$0xf]
        %v616 = vld [vmem:[#allocation7 + $0x14] sm:$0xf]
        %v617 = vld [vmem:[#allocation7 + $0x18] sm:$0xf]
        %v618 = vld [vmem:[#allocation7 + $0x1c] sm:$0xf]
        %v619 = vld [vmem:[#allocation7 + $0x20] sm:$0xf]
        %v620 = vld [vmem:[#allocation7 + $0x24] sm:$0xf]
        %v621 = vld [vmem:[#allocation7 + $0x28] sm:$0xf]
        %v622 = vld [vmem:[#allocation7 + $0x2c] sm:$0xf]
        %v623 = vld [vmem:[#allocation7 + $0x30] sm:$0xf]
        %v624 = vld [vmem:[#allocation7 + $0x34] sm:$0xf]
        %v625 = vld [vmem:[#allocation7 + $0x38] sm:$0xf]
        %v626 = vld [vmem:[#allocation7 + $0x3c] sm:$0xf]
        %v643 = vunpack.c.l.b16 %v611
        %v644 = vunpack.c.l.b16 %v612
        %v645 = vunpack.c.l.b16 %v613
        %v646 = vunpack.c.l.b16 %v614
        %v647 = vunpack.c.l.b16 %v615
        %v648 = vunpack.c.l.b16 %v616
        %v649 = vunpack.c.l.b16 %v617
        %v650 = vunpack.c.l.b16 %v618
        %v651 = vunpack.c.l.b16 %v619
        %v652 = vunpack.c.l.b16 %v620
        %v653 = vunpack.c.l.b16 %v621
        %v654 = vunpack.c.l.b16 %v622
        %v655 = vunpack.c.l.b16 %v623
        %v656 = vunpack.c.l.b16 %v624
        %v657 = vunpack.c.l.b16 %v625
        %v658 = vunpack.c.l.b16 %v626
        %v659 = vpack.c.b16 %v644, %v643
        %v660 = vpack.c.b16 %v646, %v645
        %v661 = vpack.c.b16 %v648, %v647
        %v662 = vpack.c.b16 %v650, %v649
        %v663 = vpack.c.b16 %v652, %v651
        %v664 = vpack.c.b16 %v654, %v653
        %v665 = vpack.c.b16 %v656, %v655
        %v666 = vpack.c.b16 %v658, %v657
        %675 = vmatprep.subr.bf16.mxu0 0
        %676 = vmatpush1.bf16.msra.mxu0 %v659
        %677 = vmatprep.subr.bf16.mxu0 0
        %678 = vmatpush1.bf16.msra.mxu0 %v660
        %679 = vmatprep.subr.bf16.mxu0 0
        %680 = vmatpush1.bf16.msra.mxu0 %v661
        %681 = vmatprep.subr.bf16.mxu0 0
        %682 = vmatpush1.bf16.msra.mxu0 %v662
        %683 = vmatprep.subr.bf16.mxu0 0
        %684 = vmatpush1.bf16.msra.mxu0 %v663
        %685 = vmatprep.subr.bf16.mxu0 0
        %686 = vmatpush1.bf16.msra.mxu0 %v664
        %687 = vmatprep.subr.bf16.mxu0 0
        %688 = vmatpush1.bf16.msra.mxu0 %v665
        %689 = vmatprep.subr.bf16.mxu0 0
        %690 = vmatpush1.bf16.msra.mxu0 %v666
        %691 = vmatprep.subr.bf16.mxu0 0
        %692 = vmatpush1.bf16.msra.mxu0 0
        %693 = vmatprep.subr.bf16.mxu0 0
        %694 = vmatpush1.bf16.msra.mxu0 0
        %695 = vmatprep.subr.bf16.mxu0 0
        %696 = vmatpush1.bf16.msra.mxu0 0
        %697 = vmatprep.subr.bf16.mxu0 0
        %698 = vmatpush1.bf16.msra.mxu0 0
        %699 = vmatprep.subr.bf16.mxu0 0
        %700 = vmatpush1.bf16.msra.mxu0 0
        %701 = vmatprep.subr.bf16.mxu0 0
        %702 = vmatpush1.bf16.msra.mxu0 0
        %703 = vmatprep.subr.bf16.mxu0 0
        %704 = vmatpush1.bf16.msra.mxu0 0
        %705 = vmatprep.subr.bf16.mxu0 0
        %706 = vmatpush1.bf16.msra.mxu0 0
        %707 = vmatprep.mubr.bf16.mxu0 0
        %708 = vmatmul.mubr.bf16.gmra.mrb[0].mxu0 %v610
        %v709 = vpop.f32.mrb[0].mxu0
        %v710 = vadd.f32 0.0, %v709
        %v711 = vpop.f32.mrb[0].mxu0
        %v712 = vpop.f32.mrb[0].mxu0
        %v713 = vpop.f32.mrb[0].mxu0
        %714 = vdwg.mxu0
        %vm715 = vcmask 23552
        %716 = vst.msk [vmem:[%s311] sm:$0xff] %vm715, %v710
        %p717 = scmp.lt.s32.totalorder %s22, 1
        %s718 = scalar_select %p717, %s22, 1
        %s719 = smul.addr %s718, 8
        %s720 = scalar_lea.vmem %s6, %s719
        // Predicated region
        $region61: #{tpu_custom_call.1} parent=43 // pred_check
          %p721 = pneg %p171
        $region62: #{tpu_custom_call.1} parent=43 // pred_check_branch
          %723 = sbr.rel (%p721) target = $region64
        $region63: #{tpu_custom_call.1} parent=43 // pred_region
          _
        $region64: #{tpu_custom_call.1} parent=43 // pred_fallthru
          _
      $region44: #{tpu_custom_call.1} parent=5 // pred_fallthru
        _
      %p724 = scmp.le.s32.totalorder 2, %s17
      // Predicated region
      $region65: #{tpu_custom_call.1} parent=5 // pred_check
        %p725 = pneg %p724
      $region66: #{tpu_custom_call.1} parent=5 // pred_check_branch
        %727 = sbr.rel (%p725) target = $region68
      $region67: #{tpu_custom_call.1} parent=5 // pred_region
        %s728 = ssub.s32 %s17, 2
        // Predicated region
        $region69: #{tpu_custom_call.1} parent=67 // pred_check
          %p729 = pneg %p177
        $region70: #{tpu_custom_call.1} parent=67 // pred_check_branch
          %731 = sbr.rel (%p729) target = $region72
        $region71: #{tpu_custom_call.1} parent=67 // pred_region
          %p732 = scmp.lt.s32.totalorder %s23, 1
          %s733 = scalar_select %p732, %s23, 1
          %s734 = smul.addr %s733, 8
          %s735 = scalar_lea.vmem %s6, %s734
        $region72: #{tpu_custom_call.1} parent=67 // pred_fallthru
          _
      $region68: #{tpu_custom_call.1} parent=5 // pred_fallthru
        _
    $region6: #{tpu_custom_call.1} parent=1 // loop_footer
      %s21 = sadd.s32 1, %s17
    $region7: #{tpu_custom_call.1} parent=1 // loop_footer_branch
      %16 = sbr.rel target = $region3
    $region8: #{tpu_custom_call.1} parent=1 // loop_exit
      _
    %736 = vsyncpa [#allocation3], 1
    %s737 = scalar_lea.sflag [#allocation3], 1
    %738 = vsyncpa %s737, 1
    %739 = vsyncpa [#allocation5], 1
    %740 = vsyncpa [#allocation8], 1

</llo_original>
